<compile_context>
chip_gen: v7x
topology: tpu7x:2x2x1
jax: 0.10.0
libtpu: 0.0.40
codegen_flags: <defaults>
</compile_context>

<pallas_src>
import jax
import jax.numpy as jnp
from jax.experimental import pallas as pl
from jax.experimental.pallas import tpu as pltpu


def _round_up(a, b):
    return (a + b - 1) // b * b


def transition_kernel(x_ref, scale_ref, bias_ref, w_ref, o_ref):
    # x_ref:     (TILE_ROWS, 4*C_in)   f32   window-rows tile
    # scale_ref: (1, 4*C_in)           f32   gamma / sqrt(var+eps), tiled over 4 window slots
    # bias_ref:  (1, 4*C_in)           f32   beta - mean*scale,     tiled over 4 window slots
    # w_ref:     (4*C_in, C_out_p)     bf16/f32  conv weight * 0.25, replicated, lane-padded
    # o_ref:     (TILE_ROWS, C_out_p)  f32
    y = jnp.maximum(x_ref[...] * scale_ref[...] + bias_ref[...], 0.0)  # BN affine + ReLU (VPU)
    o_ref[...] = jnp.dot(
        y.astype(w_ref.dtype), w_ref[...], preferred_element_type=jnp.float32
    ).astype(o_ref.dtype)


def transition_forward(x_nchw, gamma, beta, running_mean, running_var, conv_w,
                       eps=1e-5, tile_rows=512, use_bf16=True):
    """x_nchw: (N, C_in, H, W) float32.  conv_w: (C_out, C_in, 1, 1)."""
    N, C_in, H, W = x_nchw.shape
    C_out = conv_w.shape[0]
    Ho, Wo = H // 2, W // 2
    rows = N * Ho * Wo

    # --- fold eval-mode BN into a per-channel affine ---
    scale_c = gamma / jnp.sqrt(running_var + eps)          # (C_in,)
    bias_c = beta - running_mean * scale_c                 # (C_in,)

    # --- NCHW -> window rows (N*Ho*Wo, 4*C_in) in ONE transpose/copy pass ---
    # (avg_pool2d floor-drops odd trailing rows/cols, so crop; the reshapes are free.)
    x = x_nchw[:, :, : 2 * Ho, : 2 * Wo]
    x6 = x.reshape(N, C_in, Ho, 2, Wo, 2)
    x_win = jnp.transpose(x6, (0, 2, 4, 3, 5, 1))          # (N, Ho, Wo, kh, kw, C)
    x_win = x_win.reshape(rows, 4 * C_in)

    # --- pick the row tile; pad rows so the grid divides evenly (no assert) ---
    tile_rows = max(8, min(int(tile_rows), _round_up(rows, 8)))
    tile_rows = _round_up(tile_rows, 8)
    rows_p = _round_up(rows, tile_rows)
    if rows_p != rows:
        x_win = jnp.pad(x_win, ((0, rows_p - rows), (0, 0)))

    # BN params tiled over the 4 window slots (feature order is (kh, kw, c)).
    scale_big = jnp.tile(scale_c, 4).reshape(1, 4 * C_in).astype(jnp.float32)
    bias_big = jnp.tile(bias_c, 4).reshape(1, 4 * C_in).astype(jnp.float32)

    # Conv weight (C_out, C_in, 1, 1) -> (C_in, C_out); fold the 0.25 pool factor,
    # replicate across the 4 window slots, pad C_out to a lane-dense multiple of 128.
    w_mat = jnp.transpose(conv_w[:, :, 0, 0], (1, 0))      # (C_in, C_out)
    w_rep = jnp.tile(0.25 * w_mat, (4, 1))                 # (4*C_in, C_out)
    c_out_p = _round_up(C_out, 128)
    if c_out_p != C_out:
        w_rep = jnp.pad(w_rep, ((0, 0), (0, c_out_p - C_out)))
    w_rep = w_rep.astype(jnp.bfloat16 if use_bf16 else jnp.float32)

    grid = (rows_p // tile_rows,)

    out_rows = pl.pallas_call(
        transition_kernel,
        out_shape=jax.ShapeDtypeStruct((rows_p, c_out_p), jnp.float32),
        grid_spec=pltpu.PrefetchScalarGridSpec(
            num_scalar_prefetch=0,
            grid=grid,
            in_specs=[
                pl.BlockSpec((tile_rows, 4 * C_in), lambda i: (i, 0)),
                pl.BlockSpec((1, 4 * C_in), lambda i: (0, 0)),
                pl.BlockSpec((1, 4 * C_in), lambda i: (0, 0)),
                pl.BlockSpec((4 * C_in, c_out_p), lambda i: (0, 0)),
            ],
            out_specs=pl.BlockSpec((tile_rows, c_out_p), lambda i: (i, 0)),
        ),
        compiler_params=pltpu.CompilerParams(
            dimension_semantics=("parallel",),
            vmem_limit_bytes=64 * 1024 * 1024,
        ),
    )(x_win, scale_big, bias_big, w_rep)

    # --- back to NCHW output (one transpose pass; slice/reshape are cheap) ---
    out = out_rows[:rows, :C_out].reshape(N, Ho, Wo, C_out)
    return jnp.transpose(out, (0, 3, 1, 2))


def transition_reference(x_nchw, gamma, beta, running_mean, running_var, conv_w, eps=1e-5):
    """Pure-JAX f32 reference mirroring the PyTorch forward (eval-mode BN)."""
    scale = (gamma / jnp.sqrt(running_var + eps)).reshape(1, -1, 1, 1)
    bias = (beta - running_mean * gamma / jnp.sqrt(running_var + eps)).reshape(1, -1, 1, 1)
    y = jnp.maximum(x_nchw * scale + bias, 0.0)
    z = jnp.einsum("nchw,oc->nohw", y, conv_w[:, :, 0, 0])
    N, C_out, H, W = z.shape
    z = z.reshape(N, C_out, H // 2, 2, W // 2, 2)
    return z.mean(axis=(3, 5))


if __name__ == "__main__":
    key = jax.random.PRNGKey(0)
    N, C_in, H, W = 2, 4, 16, 16
    C_out = 8

    k = jax.random.split(key, 6)
    x = jax.random.normal(k[0], (N, C_in, H, W), dtype=jnp.float32)
    gamma = jax.random.uniform(k[1], (C_in,), minval=0.5, maxval=1.5, dtype=jnp.float32)
    beta = jax.random.normal(k[2], (C_in,), dtype=jnp.float32) * 0.1
    running_mean = jax.random.normal(k[3], (C_in,), dtype=jnp.float32) * 0.1
    running_var = jax.random.uniform(k[4], (C_in,), minval=0.5, maxval=1.5, dtype=jnp.float32)
    conv_w = jax.random.normal(k[5], (C_out, C_in, 1, 1), dtype=jnp.float32) * 0.2

    ref = transition_reference(x, gamma, beta, running_mean, running_var, conv_w)

    # Exact f32 matmul path.
    out_f32 = transition_forward(x, gamma, beta, running_mean, running_var, conv_w,
                                 use_bf16=False)
    out_f32 = jax.block_until_ready(out_f32)
    assert out_f32.shape == (N, C_out, H // 2, W // 2), out_f32.shape
    assert jnp.allclose(out_f32, ref, rtol=1e-5, atol=1e-5), \
        float(jnp.max(jnp.abs(out_f32 - ref)))

    # Default fast path: bf16 matmul operands, f32 accumulation (looser tolerance).
    out_bf16 = transition_forward(x, gamma, beta, running_mean, running_var, conv_w)
    out_bf16 = jax.block_until_ready(out_bf16)
    assert out_bf16.shape == (N, C_out, H // 2, W // 2), out_bf16.shape
    assert jnp.allclose(out_bf16, ref, rtol=5e-2, atol=5e-2), \
        float(jnp.max(jnp.abs(out_bf16 - ref)))

    print("KERNEL_OK")
</pallas_src>

<mosaic_0001>
module attributes {stable_mosaic.version = 11 : i64} {
  func.func @transition_kernel(%arg0: i32, %arg1: memref<128x16xf32, #tpu.memory_space<vmem>>, %arg2: memref<1x16xf32, #tpu.memory_space<vmem>>, %arg3: memref<1x16xf32, #tpu.memory_space<vmem>>, %arg4: memref<16x128xf32, #tpu.memory_space<vmem>>, %arg5: memref<128x128xf32, #tpu.memory_space<vmem>>) attributes {dimension_semantics = [#tpu.dimension_semantics<parallel>], iteration_bounds = array<i64: 1>, scalar_prefetch = 0 : i64, scratch_operands = 0 : i64, tpu.core_type = #tpu.core_type<tc>, window_params = [{transform_indices = @transform_0, window_bounds = array<i64: 128, 16>}, {pipeline_mode = #tpu.pipeline_mode<synchronous>, transform_indices = @transform_1, window_bounds = array<i64: 1, 16>}, {pipeline_mode = #tpu.pipeline_mode<synchronous>, transform_indices = @transform_2, window_bounds = array<i64: 1, 16>}, {pipeline_mode = #tpu.pipeline_mode<synchronous>, transform_indices = @transform_3, window_bounds = array<i64: 16, 128>}, {transform_indices = @transform_4, window_bounds = array<i64: 128, 128>}]} {
    %c0 = arith.constant 0 : index
    %c0_0 = arith.constant 0 : index
    %0 = vector.load %arg1[%c0, %c0_0] : memref<128x16xf32, #tpu.memory_space<vmem>>, vector<128x16xf32>
    %c0_1 = arith.constant 0 : index
    %c0_2 = arith.constant 0 : index
    %1 = vector.load %arg2[%c0_1, %c0_2] : memref<1x16xf32, #tpu.memory_space<vmem>>, vector<1x16xf32>
    %2 = vector.broadcast %1 : vector<1x16xf32> to vector<128x16xf32>
    %3 = arith.mulf %0, %2 : vector<128x16xf32>
    %c0_3 = arith.constant 0 : index
    %c0_4 = arith.constant 0 : index
    %4 = vector.load %arg3[%c0_3, %c0_4] : memref<1x16xf32, #tpu.memory_space<vmem>>, vector<1x16xf32>
    %5 = vector.broadcast %4 : vector<1x16xf32> to vector<128x16xf32>
    %6 = arith.addf %3, %5 : vector<128x16xf32>
    %cst = arith.constant 0.000000e+00 : f32
    %7 = vector.broadcast %cst : f32 to vector<128x16xf32>
    %8 = arith.maximumf %6, %7 : vector<128x16xf32>
    %c0_5 = arith.constant 0 : index
    %c0_6 = arith.constant 0 : index
    %9 = vector.load %arg4[%c0_5, %c0_6] : memref<16x128xf32, #tpu.memory_space<vmem>>, vector<16x128xf32>
    %cst_7 = arith.constant dense<0.000000e+00> : vector<128x128xf32>
    %10 = tpu.matmul %8, %9, %cst_7 {dimension_numbers = #tpu.dot_dimension_numbers<[1], [0], [0], [1], [0, 0, 1, 1], [], []>} : vector<128x16xf32>, vector<16x128xf32>, vector<128x128xf32> -> vector<128x128xf32>
    %c0_8 = arith.constant 0 : index
    %c0_9 = arith.constant 0 : index
    %11 = vector.load %arg5[%c0_8, %c0_9] : memref<128x128xf32, #tpu.memory_space<vmem>>, vector<128x128xf32>
    tpu.vector_store %arg5[%c0_8, %c0_9], %10 {strides = array<i32>} : memref<128x128xf32, #tpu.memory_space<vmem>>, vector<128x128xf32>,
    return
  }
  func.func @transform_0(%arg0: i32) -> (i32, i32) {
    %c0_i32 = arith.constant 0 : i32
    %c0_i32_0 = arith.constant 0 : i32
    return %arg0, %c0_i32 : i32, i32
  }
  func.func @transform_1(%arg0: i32) -> (i32, i32) {
    %c0_i32 = arith.constant 0 : i32
    %c0_i32_0 = arith.constant 0 : i32
    %c0_i32_1 = arith.constant 0 : i32
    return %c0_i32, %c0_i32_0 : i32, i32
  }
  func.func @transform_2(%arg0: i32) -> (i32, i32) {
    %c0_i32 = arith.constant 0 : i32
    %c0_i32_0 = arith.constant 0 : i32
    %c0_i32_1 = arith.constant 0 : i32
    return %c0_i32, %c0_i32_0 : i32, i32
  }
  func.func @transform_3(%arg0: i32) -> (i32, i32) {
    %c0_i32 = arith.constant 0 : i32
    %c0_i32_0 = arith.constant 0 : i32
    %c0_i32_1 = arith.constant 0 : i32
    return %c0_i32, %c0_i32_0 : i32, i32
  }
  func.func @transform_4(%arg0: i32) -> (i32, i32) {
    %c0_i32 = arith.constant 0 : i32
    %c0_i32_0 = arith.constant 0 : i32
    return %arg0, %c0_i32 : i32, i32
  }
}

</mosaic_0001>

<llo_original>
// kernel: tpu_custom_call.1
$region0: #{tpu_custom_call.1}
  #allocation0 [shape = 'u32[]', space=smem, size = 0x4, offset = 0x4, fixed_abs, tag = 'smem constant byte address 0x4 - core index']
  #allocation1 [shape = 'u32[144,128]{1,0:T(1,128)}', space=vmem, size = 0x12000, scoped, tag = 'internal scratch']
  %s0 = inlined_call_operand.hbm [shape: f32[128,16], index: 0, kind: input, shape index: {}]
  %s1 = inlined_call_operand.hbm [shape: f32[1,16], index: 1, kind: input, shape index: {}]
  %s2 = inlined_call_operand.hbm [shape: f32[1,16], index: 2, kind: input, shape index: {}]
  %s3 = inlined_call_operand.hbm [shape: f32[16,128], index: 3, kind: input, shape index: {}]
  %s4 = inlined_call_operand.hbm [shape: f32[128,128], index: 4, kind: output, shape index: {}]
  %s5 = sld [smem:[#allocation0]]
  $region42: #{tpu_custom_call.1} parent=0
    _
  %s7 = ssub.s32 1, %s5
  %s8 = scalar_select 0, %s7, %s5
  $region1: #{tpu_custom_call.1} parent=0
    #allocation2 [shape = 'u8[65536]{0}', space=vmem, size = 0x10000, scoped, tag = 'input window, operand 0, single buffered']
    #allocation3 [shape = 's32[1]{0}', space=sflag, size = 0x4, scoped, tag = 'scoped memory for tpu_custom_call.1']
    #allocation4 [shape = 's32[1]{0}', space=sflag, size = 0x4, scoped, tag = 'scoped memory for tpu_custom_call.1']
    #allocation5 [shape = 'u8[512]{0}', space=vmem, size = 0x400, scoped, tag = 'input window, operand 1, single buffered']
    #allocation6 [shape = 's32[1]{0}', space=sflag, size = 0x4, scoped, tag = 'scoped memory for tpu_custom_call.1']
    #allocation7 [shape = 'u8[512]{0}', space=vmem, size = 0x400, scoped, tag = 'input window, operand 2, single buffered']
    #allocation8 [shape = 'u8[8192]{0}', space=vmem, size = 0x2000, scoped, tag = 'input window, operand 3, single buffered']
    #allocation9 [shape = 's32[1]{0}', space=sflag, size = 0x4, scoped, tag = 'scoped memory for tpu_custom_call.1']
    #allocation10 [shape = 'u8[65536]{0}', space=vmem, size = 0x10000, scoped, tag = 'output window, operand 0, single buffered']
    %9 = vsyncpa [#allocation3], 0
    %10 = vsyncpa [#allocation6], 0
    %11 = vsyncpa [#allocation9], 0
    %12 = vsyncpa [#allocation4], 0
    // Predicated region
    $region2: #{tpu_custom_call.1} parent=1 // pred_check
      _
    $region3: #{tpu_custom_call.1} parent=1 // pred_check_branch
      %14 = sbr.rel (0) target = $region5
    $region4: #{tpu_custom_call.1} parent=1 // pred_region
      %s16 = ssub.s32 2048, 2048
      %17 = vsyncadd [#allocation3], %s16
      %s18 = sshll.u32 [#allocation2], 4
      %s19 = int_to_ptr.vmem [resolvable:$true] %s18
      %24 = dma.hbm_to_vmem [thread:$0]  %s0, 2048, %s19, [#allocation3], 128, 128, 8
    $region5: #{tpu_custom_call.1} parent=1 // pred_fallthru
      _
    // Predicated region
    $region6: #{tpu_custom_call.1} parent=1 // pred_check
      _
    $region7: #{tpu_custom_call.1} parent=1 // pred_check_branch
      %26 = sbr.rel (0) target = $region9
    $region8: #{tpu_custom_call.1} parent=1 // pred_region
      %s28 = ssub.s32 16, 16
      %29 = vsyncadd [#allocation6], %s28
      %s31 = sshll.u32 [#allocation5], 4
      %s32 = int_to_ptr.vmem [resolvable:$true] %s31
      %34 = dma.hbm_to_vmem [thread:$0]  %s1, 16, %s32, [#allocation6]
    $region9: #{tpu_custom_call.1} parent=1 // pred_fallthru
      _
    // Predicated region
    $region10: #{tpu_custom_call.1} parent=1 // pred_check
      _
    $region11: #{tpu_custom_call.1} parent=1 // pred_check_branch
      %36 = sbr.rel (0) target = $region13
    $region12: #{tpu_custom_call.1} parent=1 // pred_region
      %s38 = ssub.s32 16, 16
      %39 = vsyncadd [#allocation6], %s38
      %s41 = sshll.u32 [#allocation7], 4
      %s42 = int_to_ptr.vmem [resolvable:$true] %s41
      %44 = dma.hbm_to_vmem [thread:$0]  %s2, 16, %s42, [#allocation6]
    $region13: #{tpu_custom_call.1} parent=1 // pred_fallthru
      _
    // Predicated region
    $region14: #{tpu_custom_call.1} parent=1 // pred_check
      _
    $region15: #{tpu_custom_call.1} parent=1 // pred_check_branch
      %46 = sbr.rel (0) target = $region17
    $region16: #{tpu_custom_call.1} parent=1 // pred_region
      %s48 = ssub.s32 256, 256
      %49 = vsyncadd [#allocation9], %s48
      %s50 = sshll.u32 [#allocation8], 4
      %s51 = int_to_ptr.vmem [resolvable:$true] %s50
      %56 = dma.hbm_to_vmem [thread:$0]  %s3, 256, %s51, [#allocation9], 128, 128, 8
    $region17: #{tpu_custom_call.1} parent=1 // pred_fallthru
      _
    // Predicated region
    $region18: #{tpu_custom_call.1} parent=1 // pred_check
      _
    $region19: #{tpu_custom_call.1} parent=1 // pred_check_branch
      %58 = sbr.rel (0) target = $region21
    $region20: #{tpu_custom_call.1} parent=1 // pred_region
      %59 = dma.done [#allocation3], 2048
    $region21: #{tpu_custom_call.1} parent=1 // pred_fallthru
      _
    // Predicated region
    $region22: #{tpu_custom_call.1} parent=1 // pred_check
      _
    $region23: #{tpu_custom_call.1} parent=1 // pred_check_branch
      %61 = sbr.rel (0) target = $region25
    $region24: #{tpu_custom_call.1} parent=1 // pred_region
      %62 = dma.done [#allocation6], 16
    $region25: #{tpu_custom_call.1} parent=1 // pred_fallthru
      _
    // Predicated region
    $region26: #{tpu_custom_call.1} parent=1 // pred_check
      _
    $region27: #{tpu_custom_call.1} parent=1 // pred_check_branch
      %64 = sbr.rel (0) target = $region29
    $region28: #{tpu_custom_call.1} parent=1 // pred_region
      %65 = dma.done [#allocation6], 16
    $region29: #{tpu_custom_call.1} parent=1 // pred_fallthru
      _
    // Predicated region
    $region30: #{tpu_custom_call.1} parent=1 // pred_check
      _
    $region31: #{tpu_custom_call.1} parent=1 // pred_check_branch
      %67 = sbr.rel (0) target = $region33
    $region32: #{tpu_custom_call.1} parent=1 // pred_region
      %68 = dma.done [#allocation9], 256
    $region33: #{tpu_custom_call.1} parent=1 // pred_fallthru
      _
    %v69 = vld [vmem:[#allocation2] sm:$0xff]
    %v70 = vld [vmem:[#allocation2 + $0x8] sm:$0xff]
    %v71 = vld [vmem:[#allocation2 + $0x10] sm:$0xff]
    %v72 = vld [vmem:[#allocation2 + $0x18] sm:$0xff]
    %v73 = vld [vmem:[#allocation2 + $0x20] sm:$0xff]
    %v74 = vld [vmem:[#allocation2 + $0x28] sm:$0xff]
    %v75 = vld [vmem:[#allocation2 + $0x30] sm:$0xff]
    %v76 = vld [vmem:[#allocation2 + $0x38] sm:$0xff]
    %v77 = vld [vmem:[#allocation2 + $0x40] sm:$0xff]
    %v78 = vld [vmem:[#allocation2 + $0x48] sm:$0xff]
    %v79 = vld [vmem:[#allocation2 + $0x50] sm:$0xff]
    %v80 = vld [vmem:[#allocation2 + $0x58] sm:$0xff]
    %v81 = vld [vmem:[#allocation2 + $0x60] sm:$0xff]
    %v82 = vld [vmem:[#allocation2 + $0x68] sm:$0xff]
    %v83 = vld [vmem:[#allocation2 + $0x70] sm:$0xff]
    %v84 = vld [vmem:[#allocation2 + $0x78] sm:$0xff]
    %v85 = vld [vmem:[#allocation5] sm:$0x1]
    %v87 = vlaneseq
    %v88 = vshrl.u32 %v87, 7
    %v89 = vsub.s32 0, %v88
    %v90 = vrot.slane %v85, %v89
    %v92 = vmul.f32 %v69, %v90
    %v93 = vmul.f32 %v70, %v90
    %v94 = vmul.f32 %v71, %v90
    %v95 = vmul.f32 %v72, %v90
    %v96 = vmul.f32 %v73, %v90
    %v97 = vmul.f32 %v74, %v90
    %v98 = vmul.f32 %v75, %v90
    %v99 = vmul.f32 %v76, %v90
    %v100 = vmul.f32 %v77, %v90
    %v101 = vmul.f32 %v78, %v90
    %v102 = vmul.f32 %v79, %v90
    %v103 = vmul.f32 %v80, %v90
    %v104 = vmul.f32 %v81, %v90
    %v105 = vmul.f32 %v82, %v90
    %v106 = vmul.f32 %v83, %v90
    %v107 = vmul.f32 %v84, %v90
    %v108 = vld [vmem:[#allocation7] sm:$0x1]
    %v110 = vlaneseq
    %v111 = vshrl.u32 %v110, 7
    %v112 = vsub.s32 0, %v111
    %v113 = vrot.slane %v108, %v112
    %v115 = vadd.f32 %v92, %v113
    %v116 = vadd.f32 %v93, %v113
    %v117 = vadd.f32 %v94, %v113
    %v118 = vadd.f32 %v95, %v113
    %v119 = vadd.f32 %v96, %v113
    %v120 = vadd.f32 %v97, %v113
    %v121 = vadd.f32 %v98, %v113
    %v122 = vadd.f32 %v99, %v113
    %v123 = vadd.f32 %v100, %v113
    %v124 = vadd.f32 %v101, %v113
    %v125 = vadd.f32 %v102, %v113
    %v126 = vadd.f32 %v103, %v113
    %v127 = vadd.f32 %v104, %v113
    %v128 = vadd.f32 %v105, %v113
    %v129 = vadd.f32 %v106, %v113
    %v130 = vadd.f32 %v107, %v113
    %v131 = vmax.f32 %v115, 0.0
    %v132 = vmax.f32 %v116, 0.0
    %v133 = vmax.f32 %v117, 0.0
    %v134 = vmax.f32 %v118, 0.0
    %v135 = vmax.f32 %v119, 0.0
    %v136 = vmax.f32 %v120, 0.0
    %v137 = vmax.f32 %v121, 0.0
    %v138 = vmax.f32 %v122, 0.0
    %v139 = vmax.f32 %v123, 0.0
    %v140 = vmax.f32 %v124, 0.0
    %v141 = vmax.f32 %v125, 0.0
    %v142 = vmax.f32 %v126, 0.0
    %v143 = vmax.f32 %v127, 0.0
    %v144 = vmax.f32 %v128, 0.0
    %v145 = vmax.f32 %v129, 0.0
    %v146 = vmax.f32 %v130, 0.0
    %v147 = vld [vmem:[#allocation8] sm:$0xff]
    %v148 = vld [vmem:[#allocation8 + $0x8] sm:$0xff]
    %vm149 = vcmask 130048
    %v151 = vsel %vm149, %v131, 0
    %v154 = vsel %vm149, %v132, 0
    %v157 = vsel %vm149, %v133, 0
    %v160 = vsel %vm149, %v134, 0
    %v163 = vsel %vm149, %v135, 0
    %v166 = vsel %vm149, %v136, 0
    %v169 = vsel %vm149, %v137, 0
    %v172 = vsel %vm149, %v138, 0
    %v175 = vsel %vm149, %v139, 0
    %v178 = vsel %vm149, %v140, 0
    %v181 = vsel %vm149, %v141, 0
    %v184 = vsel %vm149, %v142, 0
    %v187 = vsel %vm149, %v143, 0
    %v190 = vsel %vm149, %v144, 0
    %v193 = vsel %vm149, %v145, 0
    %v196 = vsel %vm149, %v146, 0
    %198 = vmatprep.subr.mxu0 0.0
    %199 = vmatpush1.msra.mxu0 %v147
    %200 = vmatprep.subr.mxu0 0.0
    %201 = vmatpush1.msra.mxu0 %v148
    %202 = vmatprep.subr.mxu0 0.0
    %203 = vmatpush1.msra.mxu0 0.0
    %204 = vmatprep.subr.mxu0 0.0
    %205 = vmatpush1.msra.mxu0 0.0
    %206 = vmatprep.subr.mxu0 0.0
    %207 = vmatpush1.msra.mxu0 0.0
    %208 = vmatprep.subr.mxu0 0.0
    %209 = vmatpush1.msra.mxu0 0.0
    %210 = vmatprep.subr.mxu0 0.0
    %211 = vmatpush1.msra.mxu0 0.0
    %212 = vmatprep.subr.mxu0 0.0
    %213 = vmatpush1.msra.mxu0 0.0
    %214 = vmatprep.subr.mxu0 0.0
    %215 = vmatpush1.msra.mxu0 0.0
    %216 = vmatprep.subr.mxu0 0.0
    %217 = vmatpush1.msra.mxu0 0.0
    %218 = vmatprep.subr.mxu0 0.0
    %219 = vmatpush1.msra.mxu0 0.0
    %220 = vmatprep.subr.mxu0 0.0
    %221 = vmatpush1.msra.mxu0 0.0
    %222 = vmatprep.subr.mxu0 0.0
    %223 = vmatpush1.msra.mxu0 0.0
    %224 = vmatprep.subr.mxu0 0.0
    %225 = vmatpush1.msra.mxu0 0.0
    %226 = vmatprep.subr.mxu0 0.0
    %227 = vmatpush1.msra.mxu0 0.0
    %228 = vmatprep.subr.mxu0 0.0
    %229 = vmatpush1.msra.mxu0 0.0
    %230 = vmatprep.subr.mxu0 0.0
    %231 = vmatpush1.msra.mxu0 0.0
    %232 = vmatprep.subr.mxu0 0.0
    %233 = vmatpush1.msra.mxu0 0.0
    %234 = vmatprep.subr.mxu0 0.0
    %235 = vmatpush1.msra.mxu0 0.0
    %236 = vmatprep.subr.mxu0 0.0
    %237 = vmatpush1.msra.mxu0 0.0
    %238 = vmatprep.subr.mxu0 0.0
    %239 = vmatpush1.msra.mxu0 0.0
    %240 = vmatprep.subr.mxu0 0.0
    %241 = vmatpush1.msra.mxu0 0.0
    %242 = vmatprep.subr.mxu0 0.0
    %243 = vmatpush1.msra.mxu0 0.0
    %244 = vmatprep.subr.mxu0 0.0
    %245 = vmatpush1.msra.mxu0 0.0
    %246 = vmatprep.subr.mxu0 0.0
    %247 = vmatpush1.msra.mxu0 0.0
    %248 = vmatprep.subr.mxu0 0.0
    %249 = vmatpush1.msra.mxu0 0.0
    %250 = vmatprep.subr.mxu0 0.0
    %251 = vmatpush1.msra.mxu0 0.0
    %252 = vmatprep.subr.mxu0 0.0
    %253 = vmatpush1.msra.mxu0 0.0
    %254 = vmatprep.subr.mxu0 0.0
    %255 = vmatpush1.msra.mxu0 0.0
    %256 = vmatprep.subr.mxu0 0.0
    %257 = vmatpush1.msra.mxu0 0.0
    %258 = vmatprep.subr.mxu0 0.0
    %259 = vmatpush1.msra.mxu0 0.0
    %260 = vmatprep.subr.mxu0 0.0
    %261 = vmatpush1.msra.mxu0 0.0
    %262 = vmatprep.mubr.f32.mxu0 0.0
    %263 = vmatmul.mubr.f32.gmra.mrb[0].mxu0 %v151
    %v264 = vpop.f32.mrb[0].mxu0
    %v265 = vadd.f32 0.0, %v264
    %v266 = vpop.f32.mrb[0].mxu0
    %267 = vmatprep.mubr.f32.mxu0 0.0
    %268 = vmatmul.mubr.f32.gmra.mrb[0].mxu0 %v154
    %v269 = vpop.f32.mrb[0].mxu0
    %v270 = vadd.f32 0.0, %v269
    %v271 = vpop.f32.mrb[0].mxu0
    %272 = vmatprep.mubr.f32.mxu0 0.0
    %273 = vmatmul.mubr.f32.gmra.mrb[0].mxu0 %v157
    %v274 = vpop.f32.mrb[0].mxu0
    %v275 = vadd.f32 0.0, %v274
    %v276 = vpop.f32.mrb[0].mxu0
    %277 = vmatprep.mubr.f32.mxu0 0.0
    %278 = vmatmul.mubr.f32.gmra.mrb[0].mxu0 %v160
    %v279 = vpop.f32.mrb[0].mxu0
    %v280 = vadd.f32 0.0, %v279
    %v281 = vpop.f32.mrb[0].mxu0
    %282 = vmatprep.mubr.f32.mxu0 0.0
    %283 = vmatmul.mubr.f32.gmra.mrb[0].mxu0 %v163
    %v284 = vpop.f32.mrb[0].mxu0
    %v285 = vadd.f32 0.0, %v284
    %v286 = vpop.f32.mrb[0].mxu0
    %287 = vmatprep.mubr.f32.mxu0 0.0
    %288 = vmatmul.mubr.f32.gmra.mrb[0].mxu0 %v166
    %v289 = vpop.f32.mrb[0].mxu0
    %v290 = vadd.f32 0.0, %v289
    %v291 = vpop.f32.mrb[0].mxu0
    %292 = vmatprep.mubr.f32.mxu0 0.0
    %293 = vmatmul.mubr.f32.gmra.mrb[0].mxu0 %v169
    %v294 = vpop.f32.mrb[0].mxu0
    %v295 = vadd.f32 0.0, %v294
    %v296 = vpop.f32.mrb[0].mxu0
    %297 = vmatprep.mubr.f32.mxu0 0.0
    %298 = vmatmul.mubr.f32.gmra.mrb[0].mxu0 %v172
    %v299 = vpop.f32.mrb[0].mxu0
    %v300 = vadd.f32 0.0, %v299
    %v301 = vpop.f32.mrb[0].mxu0
    %302 = vmatprep.mubr.f32.mxu0 0.0
    %303 = vmatmul.mubr.f32.gmra.mrb[0].mxu0 %v175
    %v304 = vpop.f32.mrb[0].mxu0
    %v305 = vadd.f32 0.0, %v304
    %v306 = vpop.f32.mrb[0].mxu0
    %307 = vmatprep.mubr.f32.mxu0 0.0
    %308 = vmatmul.mubr.f32.gmra.mrb[0].mxu0 %v178
    %v309 = vpop.f32.mrb[0].mxu0
    %v310 = vadd.f32 0.0, %v309
    %v311 = vpop.f32.mrb[0].mxu0
    %312 = vmatprep.mubr.f32.mxu0 0.0
    %313 = vmatmul.mubr.f32.gmra.mrb[0].mxu0 %v181
    %v314 = vpop.f32.mrb[0].mxu0
    %v315 = vadd.f32 0.0, %v314
    %v316 = vpop.f32.mrb[0].mxu0
    %317 = vmatprep.mubr.f32.mxu0 0.0
    %318 = vmatmul.mubr.f32.gmra.mrb[0].mxu0 %v184
    %v319 = vpop.f32.mrb[0].mxu0
    %v320 = vadd.f32 0.0, %v319
    %v321 = vpop.f32.mrb[0].mxu0
    %322 = vmatprep.mubr.f32.mxu0 0.0
    %323 = vmatmul.mubr.f32.gmra.mrb[0].mxu0 %v187
    %v324 = vpop.f32.mrb[0].mxu0
    %v325 = vadd.f32 0.0, %v324
    %v326 = vpop.f32.mrb[0].mxu0
    %327 = vmatprep.mubr.f32.mxu0 0.0
    %328 = vmatmul.mubr.f32.gmra.mrb[0].mxu0 %v190
    %v329 = vpop.f32.mrb[0].mxu0
    %v330 = vadd.f32 0.0, %v329
    %v331 = vpop.f32.mrb[0].mxu0
    %332 = vmatprep.mubr.f32.mxu0 0.0
    %333 = vmatmul.mubr.f32.gmra.mrb[0].mxu0 %v193
    %v334 = vpop.f32.mrb[0].mxu0
    %v335 = vadd.f32 0.0, %v334
    %v336 = vpop.f32.mrb[0].mxu0
    %337 = vmatprep.mubr.f32.mxu0 0.0
    %338 = vmatmul.mubr.f32.gmra.mrb[0].mxu0 %v196
    %v339 = vpop.f32.mrb[0].mxu0
    %v340 = vadd.f32 0.0, %v339
    %v341 = vpop.f32.mrb[0].mxu0
    %342 = vdwg.mxu0
    %343 = vst [vmem:[#allocation10] sm:$0xff] %v265
    %344 = vst [vmem:[#allocation10 + $0x8] sm:$0xff] %v270
    %345 = vst [vmem:[#allocation10 + $0x10] sm:$0xff] %v275
    %346 = vst [vmem:[#allocation10 + $0x18] sm:$0xff] %v280
    %347 = vst [vmem:[#allocation10 + $0x20] sm:$0xff] %v285
    %348 = vst [vmem:[#allocation10 + $0x28] sm:$0xff] %v290
    %349 = vst [vmem:[#allocation10 + $0x30] sm:$0xff] %v295
    %350 = vst [vmem:[#allocation10 + $0x38] sm:$0xff] %v300
    %351 = vst [vmem:[#allocation10 + $0x40] sm:$0xff] %v305
    %352 = vst [vmem:[#allocation10 + $0x48] sm:$0xff] %v310
    %353 = vst [vmem:[#allocation10 + $0x50] sm:$0xff] %v315
    %354 = vst [vmem:[#allocation10 + $0x58] sm:$0xff] %v320
    %355 = vst [vmem:[#allocation10 + $0x60] sm:$0xff] %v325
    %356 = vst [vmem:[#allocation10 + $0x68] sm:$0xff] %v330
    %357 = vst [vmem:[#allocation10 + $0x70] sm:$0xff] %v335
    %358 = vst [vmem:[#allocation10 + $0x78] sm:$0xff] %v340
    // Predicated region
    $region34: #{tpu_custom_call.1} parent=1 // pred_check
      _
    $region35: #{tpu_custom_call.1} parent=1 // pred_check_branch
      %360 = sbr.rel (0) target = $region37
    $region36: #{tpu_custom_call.1} parent=1 // pred_region
      %s362 = ssub.s32 2048, 2048
      %363 = vsyncadd [#allocation4], %s362
      %s364 = sshll.u32 [#allocation10], 4
      %s365 = int_to_ptr.vmem [resolvable:$true] %s364
      %370 = dma.vmem_to_hbm [thread:$0]  %s365, 2048, %s4, [#allocation4], 128, 128, 8
    $region37: #{tpu_custom_call.1} parent=1 // pred_fallthru
      _
    // Predicated region
    $region38: #{tpu_custom_call.1} parent=1 // pred_check
      _
    $region39: #{tpu_custom_call.1} parent=1 // pred_check_branch
      %372 = sbr.rel (0) target = $region41
    $region40: #{tpu_custom_call.1} parent=1 // pred_region
      %373 = dma.done [#allocation4], 2048
    $region41: #{tpu_custom_call.1} parent=1 // pred_fallthru
      _
    %374 = vsyncpa [#allocation3], 1
    %375 = vsyncpa [#allocation6], 1
    %376 = vsyncpa [#allocation9], 1
    %377 = vsyncpa [#allocation4], 1

</llo_original>
